<compile_context>
chip_gen: v6e
topology: v6e:2x2x1
jax: 0.10.0
libtpu: 0.0.40
codegen_flags: <defaults>
</compile_context>

<pallas_src>
import functools

import jax
import jax.numpy as jnp
from jax import lax
from jax.experimental import pallas as pl
from jax.experimental.pallas import tpu as pltpu

BN_EPS = 1e-5
LEAKY_SLOPE = 0.01
LANE = 128
VMEM_LIMIT = 32 * 1024 * 1024  # explicit, safe on v5e/v6e (128 MiB) and v7x (64 MiB)


def _round_up(x, m):
    return ((x + m - 1) // m) * m


# ------------------------------ Pallas kernels ------------------------------ #
def _matmul_stats_kernel(p_ref, w_ref, act_ref, stats_ref):
    # p_ref: (tm, K) bf16   w_ref: (K, Cpad) bf16
    # act_ref: (tm, Cpad) f32   stats_ref: (8, Cpad) f32 (row0=sum, row1=sumsq)
    acc = jnp.dot(p_ref[...], w_ref[...], preferred_element_type=jnp.float32)
    act_ref[...] = acc
    s = jnp.sum(acc, axis=0, keepdims=True)            # (1, Cpad)
    ss = jnp.sum(acc * acc, axis=0, keepdims=True)     # (1, Cpad)
    row = lax.broadcasted_iota(jnp.int32, (8, acc.shape[1]), 0)
    stats_ref[...] = jnp.where(row == 0, s, jnp.where(row == 1, ss, 0.0))


def _affine_lrelu_kernel(act_ref, a_ref, b_ref, o_ref):
    # Folded BN affine (a = gamma*rsqrt(var+eps), b = beta - a*mean) + LeakyReLU.
    y = act_ref[...] * a_ref[...] + b_ref[...]
    o_ref[...] = jnp.where(y >= 0.0, y, LEAKY_SLOPE * y).astype(o_ref.dtype)


# ------------------------------ pallas_call wrappers ------------------------ #
def _conv_matmul_stats(patches, w2d, tm):
    Mpad, K = patches.shape
    Cpad = w2d.shape[1]
    num_tiles = Mpad // tm
    grid_spec = pltpu.PrefetchScalarGridSpec(
        num_scalar_prefetch=0,
        grid=(num_tiles,),
        in_specs=[
            pl.BlockSpec((tm, K), lambda i: (i, 0)),
            pl.BlockSpec((K, Cpad), lambda i: (0, 0)),
        ],
        out_specs=[
            pl.BlockSpec((tm, Cpad), lambda i: (i, 0)),
            pl.BlockSpec((None, 8, Cpad), lambda i: (i, 0, 0)),
        ],
    )
    return pl.pallas_call(
        _matmul_stats_kernel,
        out_shape=(
            jax.ShapeDtypeStruct((Mpad, Cpad), jnp.float32),
            jax.ShapeDtypeStruct((num_tiles, 8, Cpad), jnp.float32),
        ),
        grid_spec=grid_spec,
        compiler_params=pltpu.CompilerParams(
            dimension_semantics=("parallel",),
            vmem_limit_bytes=VMEM_LIMIT),
    )(patches, w2d)


def _affine_lrelu(act, a, b, out_dtype, tm):
    Mpad, Cpad = act.shape
    num_tiles = Mpad // tm
    grid_spec = pltpu.PrefetchScalarGridSpec(
        num_scalar_prefetch=0,
        grid=(num_tiles,),
        in_specs=[
            pl.BlockSpec((tm, Cpad), lambda i: (i, 0)),
            pl.BlockSpec((1, Cpad), lambda i: (0, 0)),
            pl.BlockSpec((1, Cpad), lambda i: (0, 0)),
        ],
        out_specs=pl.BlockSpec((tm, Cpad), lambda i: (i, 0)),
    )
    return pl.pallas_call(
        _affine_lrelu_kernel,
        out_shape=jax.ShapeDtypeStruct((Mpad, Cpad), out_dtype),
        grid_spec=grid_spec,
        compiler_params=pltpu.CompilerParams(
            dimension_semantics=("parallel",),
            vmem_limit_bytes=VMEM_LIMIT),
    )(act, a, b)


# --------------------------------- JAX glue --------------------------------- #
def _im2col_s2_k3_p1(x_nhwc):
    """3x3 / stride-2 / pad-1 patch extraction. Returns (N*Ho*Wo, 9*Cin)."""
    N, H, W, Cin = x_nhwc.shape
    Ho, Wo = (H + 1) // 2, (W + 1) // 2
    xp = jnp.pad(x_nhwc, ((0, 0), (1, 1), (1, 1), (0, 0)))
    taps = []
    for kh in range(3):
        for kw in range(3):
            taps.append(xp[:, kh::2, kw::2, :][:, :Ho, :Wo, :])
    p = jnp.stack(taps, axis=3)                       # (N, Ho, Wo, 9, Cin)
    return p.reshape(N * Ho * Wo, 9 * Cin), (N, Ho, Wo)


def _conv_layer(x_nhwc, w_oihw, gamma, beta, out_dtype, tm):
    Cout, Cin = w_oihw.shape[0], w_oihw.shape[1]
    Cpad = _round_up(Cout, LANE)                       # lane-dense output stores

    patches, (N, Ho, Wo) = _im2col_s2_k3_p1(x_nhwc)    # bf16 patches
    M, K = patches.shape
    tm_eff = max(8, min(_round_up(M, 8), _round_up(tm, 8)))
    Mpad = _round_up(M, tm_eff)
    # Zero rows contribute nothing to sum/sumsq, so dividing by the true M below
    # keeps the batch statistics exact.
    patches = jnp.pad(patches, ((0, Mpad - M), (0, 0)))

    # (Cout, Cin, 3, 3) -> (3, 3, Cin, Cout) -> (9*Cin, Cout); bf16 + lane padding.
    w2d = jnp.transpose(w_oihw, (2, 3, 1, 0)).reshape(K, Cout).astype(jnp.bfloat16)
    w2d = jnp.pad(w2d, ((0, 0), (0, Cpad - Cout)))

    act, stats = _conv_matmul_stats(patches, w2d, tm_eff)

    # Training-mode BatchNorm: global batch mean / biased variance over N*Ho*Wo.
    s_tot = jnp.sum(stats[:, 0, :], axis=0)
    ss_tot = jnp.sum(stats[:, 1, :], axis=0)
    mean = s_tot / float(M)
    var = jnp.maximum(ss_tot / float(M) - mean * mean, 0.0)
    gamma_p = jnp.pad(gamma.astype(jnp.float32), (0, Cpad - Cout))
    beta_p = jnp.pad(beta.astype(jnp.float32), (0, Cpad - Cout))
    a = gamma_p * lax.rsqrt(var + BN_EPS)
    b = beta_p - a * mean

    y = _affine_lrelu(act, a.reshape(1, Cpad), b.reshape(1, Cpad), out_dtype, tm_eff)
    return y[:M, :Cout].reshape(N, Ho, Wo, Cout)


def conv_downsample_forward(x_nchw, params, tm=512):
    """PyTorch Conv_Downsample.forward: conv1 -> bn1 -> lrelu -> conv2 -> bn2 -> lrelu.

    Note: the convs have bias=False (as in the module); BN uses training-mode
    batch statistics (a fresh nn.Module in train mode).
    """
    x = jnp.transpose(x_nchw, (0, 2, 3, 1)).astype(jnp.bfloat16)   # NCHW -> NHWC, bf16 MXU operands
    x = _conv_layer(x, params["w1"], params["gamma1"], params["beta1"],
                    jnp.bfloat16, tm)                              # bf16 inter-layer activation
    x = _conv_layer(x, params["w2"], params["gamma2"], params["beta2"],
                    jnp.float32, tm)
    return jnp.transpose(x, (0, 3, 1, 2))                          # NHWC -> NCHW


def init_params(key, input_dim, output_dim):
    mid = int(0.5 * output_dim)
    k1, k2 = jax.random.split(key)
    return {
        "w1": 0.1 * jax.random.normal(k1, (mid, input_dim, 3, 3), jnp.float32),
        "gamma1": jnp.ones((mid,), jnp.float32),
        "beta1": jnp.zeros((mid,), jnp.float32),
        "w2": 0.1 * jax.random.normal(k2, (output_dim, mid, 3, 3), jnp.float32),
        "gamma2": jnp.ones((output_dim,), jnp.float32),
        "beta2": jnp.zeros((output_dim,), jnp.float32),
    }


# --------------------------- pure-JAX reference check ------------------------ #
def _reference_forward(x_nchw, params):
    def layer(x, w, g, b):
        y = lax.conv_general_dilated(
            x.astype(jnp.bfloat16), w.astype(jnp.bfloat16),
            window_strides=(2, 2), padding=((1, 1), (1, 1)),
            dimension_numbers=("NCHW", "OIHW", "NCHW"),
            preferred_element_type=jnp.float32)
        mean = jnp.mean(y, axis=(0, 2, 3), keepdims=True)
        var = jnp.mean(jnp.square(y - mean), axis=(0, 2, 3), keepdims=True)
        yhat = (y - mean) * lax.rsqrt(var + BN_EPS)
        y = g.reshape(1, -1, 1, 1) * yhat + b.reshape(1, -1, 1, 1)
        return jnp.where(y >= 0.0, y, LEAKY_SLOPE * y)

    x = layer(x_nchw, params["w1"], params["gamma1"], params["beta1"])
    x = layer(x, params["w2"], params["gamma2"], params["beta2"])
    return x


if __name__ == "__main__":
    key = jax.random.PRNGKey(0)
    kx, kp = jax.random.split(key)

    input_dim, output_dim = 4, 8
    x = jax.random.normal(kx, (2, input_dim, 16, 16), jnp.float32)  # NCHW, like PyTorch
    params = init_params(kp, input_dim, output_dim)

    # tm=64 forces a multi-tile grid even at these toy sizes so the tiled
    # partial-stats path is exercised; production default is tm=512.
    fwd = jax.jit(functools.partial(conv_downsample_forward, tm=64))
    out = jax.block_until_ready(fwd(x, params))
    assert out.shape == (2, output_dim, 4, 4), out.shape

    ref = jax.block_until_ready(_reference_forward(x, params))
    max_err = float(jnp.max(jnp.abs(out - ref)))
    assert jnp.allclose(out, ref, atol=2e-2, rtol=2e-2), max_err

    print("KERNEL_OK")
</pallas_src>

<mosaic_0001>
module attributes {stable_mosaic.version = 11 : i64} {
  func.func @_matmul_stats_kernel(%arg0: i32, %arg1: memref<64x36xbf16, #tpu.memory_space<vmem>>, %arg2: memref<36x128xbf16, #tpu.memory_space<vmem>>, %arg3: memref<64x128xf32, #tpu.memory_space<vmem>>, %arg4: memref<1x8x128xf32, #tpu.memory_space<vmem>>) attributes {dimension_semantics = [#tpu.dimension_semantics<parallel>], iteration_bounds = array<i64: 2>, scalar_prefetch = 0 : i64, scratch_operands = 0 : i64, tpu.core_type = #tpu.core_type<tc>, window_params = [{transform_indices = @transform_0, window_bounds = array<i64: 64, 36>}, {pipeline_mode = #tpu.pipeline_mode<synchronous>, transform_indices = @transform_1, window_bounds = array<i64: 36, 128>}, {transform_indices = @transform_2, window_bounds = array<i64: 64, 128>}, {transform_indices = @transform_3, window_bounds = array<i64: 1, 8, 128>}]} {
    %c0 = arith.constant 0 : index
    %c0_0 = arith.constant 0 : index
    %0 = vector.load %arg1[%c0, %c0_0] : memref<64x36xbf16, #tpu.memory_space<vmem>>, vector<64x36xbf16>
    %c0_1 = arith.constant 0 : index
    %c0_2 = arith.constant 0 : index
    %1 = vector.load %arg2[%c0_1, %c0_2] : memref<36x128xbf16, #tpu.memory_space<vmem>>, vector<36x128xbf16>
    %cst = arith.constant dense<0.000000e+00> : vector<64x128xf32>
    %2 = tpu.matmul %0, %1, %cst {dimension_numbers = #tpu.dot_dimension_numbers<[1], [0], [0], [1], [0, 0, 1, 1], [], []>} : vector<64x36xbf16>, vector<36x128xbf16>, vector<64x128xf32> -> vector<64x128xf32>
    %c0_3 = arith.constant 0 : index
    %c0_4 = arith.constant 0 : index
    %3 = vector.load %arg3[%c0_3, %c0_4] : memref<64x128xf32, #tpu.memory_space<vmem>>, vector<64x128xf32>
    tpu.vector_store %arg3[%c0_3, %c0_4], %2 {strides = array<i32>} : memref<64x128xf32, #tpu.memory_space<vmem>>, vector<64x128xf32>,
    %cst_5 = arith.constant dense<0.000000e+00> : vector<128xf32>
    %4 = vector.multi_reduction <add>, %2, %cst_5 [0] : vector<64x128xf32> to vector<128xf32>
    %5 = vector.shape_cast %4 : vector<128xf32> to vector<1x128xf32>
    %6 = arith.mulf %2, %2 : vector<64x128xf32>
    %cst_6 = arith.constant dense<0.000000e+00> : vector<128xf32>
    %7 = vector.multi_reduction <add>, %6, %cst_6 [0] : vector<64x128xf32> to vector<128xf32>
    %8 = vector.shape_cast %7 : vector<128xf32> to vector<1x128xf32>
    %9 = tpu.iota {dimensions = array<i32: 0>} : vector<8x128xi32>
    %c0_i32 = arith.constant 0 : i32
    %10 = vector.broadcast %c0_i32 : i32 to vector<8x128xi32>
    %11 = arith.cmpi eq, %9, %10 : vector<8x128xi32>
    %c1_i32 = arith.constant 1 : i32
    %12 = vector.broadcast %c1_i32 : i32 to vector<8x128xi32>
    %13 = arith.cmpi eq, %9, %12 : vector<8x128xi32>
    %cst_7 = arith.constant 0.000000e+00 : f32
    %14 = vector.shape_cast %8 : vector<1x128xf32> to vector<1x128xf32>
    %15 = vector.broadcast %14 : vector<1x128xf32> to vector<8x128xf32>
    %16 = vector.broadcast %cst_7 : f32 to vector<8x128xf32>
    %17 = arith.select %13, %15, %16 : vector<8x128xi1>, vector<8x128xf32>
    %18 = vector.shape_cast %5 : vector<1x128xf32> to vector<1x128xf32>
    %19 = vector.broadcast %18 : vector<1x128xf32> to vector<8x128xf32>
    %20 = arith.select %11, %19, %17 : vector<8x128xi1>, vector<8x128xf32>
    %c0_8 = arith.constant 0 : index
    %c0_9 = arith.constant 0 : index
    %c0_10 = arith.constant 0 : index
    %21 = vector.load %arg4[%c0_8, %c0_9, %c0_10] : memref<1x8x128xf32, #tpu.memory_space<vmem>>, vector<1x8x128xf32>
    %22 = vector.shape_cast %21 : vector<1x8x128xf32> to vector<8x128xf32>
    %23 = vector.shape_cast %20 : vector<8x128xf32> to vector<1x8x128xf32>
    tpu.vector_store %arg4[%c0_8, %c0_9, %c0_10], %23 {strides = array<i32>} : memref<1x8x128xf32, #tpu.memory_space<vmem>>, vector<1x8x128xf32>,
    return
  }
  func.func @transform_0(%arg0: i32) -> (i32, i32) {
    %c0_i32 = arith.constant 0 : i32
    %c0_i32_0 = arith.constant 0 : i32
    return %arg0, %c0_i32 : i32, i32
  }
  func.func @transform_1(%arg0: i32) -> (i32, i32) {
    %c0_i32 = arith.constant 0 : i32
    %c0_i32_0 = arith.constant 0 : i32
    %c0_i32_1 = arith.constant 0 : i32
    return %c0_i32, %c0_i32_0 : i32, i32
  }
  func.func @transform_2(%arg0: i32) -> (i32, i32) {
    %c0_i32 = arith.constant 0 : i32
    %c0_i32_0 = arith.constant 0 : i32
    return %arg0, %c0_i32 : i32, i32
  }
  func.func @transform_3(%arg0: i32) -> (i32, i32, i32) {
    %c0_i32 = arith.constant 0 : i32
    %c0_i32_0 = arith.constant 0 : i32
    %c0_i32_1 = arith.constant 0 : i32
    return %arg0, %c0_i32, %c0_i32_0 : i32, i32, i32
  }
}

module attributes {stable_mosaic.version = 11 : i64} {
  func.func @_affine_lrelu_kernel(%arg0: i32, %arg1: memref<64x128xf32, #tpu.memory_space<vmem>>, %arg2: memref<1x128xf32, #tpu.memory_space<vmem>>, %arg3: memref<1x128xf32, #tpu.memory_space<vmem>>, %arg4: memref<64x128xbf16, #tpu.memory_space<vmem>>) attributes {dimension_semantics = [#tpu.dimension_semantics<parallel>], iteration_bounds = array<i64: 2>, scalar_prefetch = 0 : i64, scratch_operands = 0 : i64, tpu.core_type = #tpu.core_type<tc>, window_params = [{transform_indices = @transform_0, window_bounds = array<i64: 64, 128>}, {pipeline_mode = #tpu.pipeline_mode<synchronous>, transform_indices = @transform_1, window_bounds = array<i64: 1, 128>}, {pipeline_mode = #tpu.pipeline_mode<synchronous>, transform_indices = @transform_2, window_bounds = array<i64: 1, 128>}, {transform_indices = @transform_3, window_bounds = array<i64: 64, 128>}]} {
    %c0 = arith.constant 0 : index
    %c0_0 = arith.constant 0 : index
    %0 = vector.load %arg1[%c0, %c0_0] : memref<64x128xf32, #tpu.memory_space<vmem>>, vector<64x128xf32>
    %c0_1 = arith.constant 0 : index
    %c0_2 = arith.constant 0 : index
    %1 = vector.load %arg2[%c0_1, %c0_2] : memref<1x128xf32, #tpu.memory_space<vmem>>, vector<1x128xf32>
    %2 = vector.broadcast %1 : vector<1x128xf32> to vector<64x128xf32>
    %3 = arith.mulf %0, %2 : vector<64x128xf32>
    %c0_3 = arith.constant 0 : index
    %c0_4 = arith.constant 0 : index
    %4 = vector.load %arg3[%c0_3, %c0_4] : memref<1x128xf32, #tpu.memory_space<vmem>>, vector<1x128xf32>
    %5 = vector.broadcast %4 : vector<1x128xf32> to vector<64x128xf32>
    %6 = arith.addf %3, %5 : vector<64x128xf32>
    %cst = arith.constant 0.000000e+00 : f32
    %7 = vector.broadcast %cst : f32 to vector<64x128xf32>
    %8 = arith.cmpf oge, %6, %7 : vector<64x128xf32>
    %cst_5 = arith.constant 0.00999999977 : f32
    %9 = vector.broadcast %cst_5 : f32 to vector<64x128xf32>
    %10 = arith.mulf %9, %6 : vector<64x128xf32>
    %11 = arith.select %8, %6, %10 : vector<64x128xi1>, vector<64x128xf32>
    %12 = arith.truncf %11 : vector<64x128xf32> to vector<64x128xbf16>
    %c0_6 = arith.constant 0 : index
    %c0_7 = arith.constant 0 : index
    %13 = vector.load %arg4[%c0_6, %c0_7] : memref<64x128xbf16, #tpu.memory_space<vmem>>, vector<64x128xbf16>
    tpu.vector_store %arg4[%c0_6, %c0_7], %12 {strides = array<i32>} : memref<64x128xbf16, #tpu.memory_space<vmem>>, vector<64x128xbf16>,
    return
  }
  func.func @transform_0(%arg0: i32) -> (i32, i32) {
    %c0_i32 = arith.constant 0 : i32
    %c0_i32_0 = arith.constant 0 : i32
    return %arg0, %c0_i32 : i32, i32
  }
  func.func @transform_1(%arg0: i32) -> (i32, i32) {
    %c0_i32 = arith.constant 0 : i32
    %c0_i32_0 = arith.constant 0 : i32
    %c0_i32_1 = arith.constant 0 : i32
    return %c0_i32, %c0_i32_0 : i32, i32
  }
  func.func @transform_2(%arg0: i32) -> (i32, i32) {
    %c0_i32 = arith.constant 0 : i32
    %c0_i32_0 = arith.constant 0 : i32
    %c0_i32_1 = arith.constant 0 : i32
    return %c0_i32, %c0_i32_0 : i32, i32
  }
  func.func @transform_3(%arg0: i32) -> (i32, i32) {
    %c0_i32 = arith.constant 0 : i32
    %c0_i32_0 = arith.constant 0 : i32
    return %arg0, %c0_i32 : i32, i32
  }
}

module attributes {stable_mosaic.version = 11 : i64} {
  func.func @_matmul_stats_kernel(%arg0: i32, %arg1: memref<32x36xbf16, #tpu.memory_space<vmem>>, %arg2: memref<36x128xbf16, #tpu.memory_space<vmem>>, %arg3: memref<32x128xf32, #tpu.memory_space<vmem>>, %arg4: memref<1x8x128xf32, #tpu.memory_space<vmem>>) attributes {dimension_semantics = [#tpu.dimension_semantics<parallel>], iteration_bounds = array<i64: 1>, scalar_prefetch = 0 : i64, scratch_operands = 0 : i64, tpu.core_type = #tpu.core_type<tc>, window_params = [{transform_indices = @transform_0, window_bounds = array<i64: 32, 36>}, {pipeline_mode = #tpu.pipeline_mode<synchronous>, transform_indices = @transform_1, window_bounds = array<i64: 36, 128>}, {transform_indices = @transform_2, window_bounds = array<i64: 32, 128>}, {transform_indices = @transform_3, window_bounds = array<i64: 1, 8, 128>}]} {
    %c0 = arith.constant 0 : index
    %c0_0 = arith.constant 0 : index
    %0 = vector.load %arg1[%c0, %c0_0] : memref<32x36xbf16, #tpu.memory_space<vmem>>, vector<32x36xbf16>
    %c0_1 = arith.constant 0 : index
    %c0_2 = arith.constant 0 : index
    %1 = vector.load %arg2[%c0_1, %c0_2] : memref<36x128xbf16, #tpu.memory_space<vmem>>, vector<36x128xbf16>
    %cst = arith.constant dense<0.000000e+00> : vector<32x128xf32>
    %2 = tpu.matmul %0, %1, %cst {dimension_numbers = #tpu.dot_dimension_numbers<[1], [0], [0], [1], [0, 0, 1, 1], [], []>} : vector<32x36xbf16>, vector<36x128xbf16>, vector<32x128xf32> -> vector<32x128xf32>
    %c0_3 = arith.constant 0 : index
    %c0_4 = arith.constant 0 : index
    %3 = vector.load %arg3[%c0_3, %c0_4] : memref<32x128xf32, #tpu.memory_space<vmem>>, vector<32x128xf32>
    tpu.vector_store %arg3[%c0_3, %c0_4], %2 {strides = array<i32>} : memref<32x128xf32, #tpu.memory_space<vmem>>, vector<32x128xf32>,
    %cst_5 = arith.constant dense<0.000000e+00> : vector<128xf32>
    %4 = vector.multi_reduction <add>, %2, %cst_5 [0] : vector<32x128xf32> to vector<128xf32>
    %5 = vector.shape_cast %4 : vector<128xf32> to vector<1x128xf32>
    %6 = arith.mulf %2, %2 : vector<32x128xf32>
    %cst_6 = arith.constant dense<0.000000e+00> : vector<128xf32>
    %7 = vector.multi_reduction <add>, %6, %cst_6 [0] : vector<32x128xf32> to vector<128xf32>
    %8 = vector.shape_cast %7 : vector<128xf32> to vector<1x128xf32>
    %9 = tpu.iota {dimensions = array<i32: 0>} : vector<8x128xi32>
    %c0_i32 = arith.constant 0 : i32
    %10 = vector.broadcast %c0_i32 : i32 to vector<8x128xi32>
    %11 = arith.cmpi eq, %9, %10 : vector<8x128xi32>
    %c1_i32 = arith.constant 1 : i32
    %12 = vector.broadcast %c1_i32 : i32 to vector<8x128xi32>
    %13 = arith.cmpi eq, %9, %12 : vector<8x128xi32>
    %cst_7 = arith.constant 0.000000e+00 : f32
    %14 = vector.shape_cast %8 : vector<1x128xf32> to vector<1x128xf32>
    %15 = vector.broadcast %14 : vector<1x128xf32> to vector<8x128xf32>
    %16 = vector.broadcast %cst_7 : f32 to vector<8x128xf32>
    %17 = arith.select %13, %15, %16 : vector<8x128xi1>, vector<8x128xf32>
    %18 = vector.shape_cast %5 : vector<1x128xf32> to vector<1x128xf32>
    %19 = vector.broadcast %18 : vector<1x128xf32> to vector<8x128xf32>
    %20 = arith.select %11, %19, %17 : vector<8x128xi1>, vector<8x128xf32>
    %c0_8 = arith.constant 0 : index
    %c0_9 = arith.constant 0 : index
    %c0_10 = arith.constant 0 : index
    %21 = vector.load %arg4[%c0_8, %c0_9, %c0_10] : memref<1x8x128xf32, #tpu.memory_space<vmem>>, vector<1x8x128xf32>
    %22 = vector.shape_cast %21 : vector<1x8x128xf32> to vector<8x128xf32>
    %23 = vector.shape_cast %20 : vector<8x128xf32> to vector<1x8x128xf32>
    tpu.vector_store %arg4[%c0_8, %c0_9, %c0_10], %23 {strides = array<i32>} : memref<1x8x128xf32, #tpu.memory_space<vmem>>, vector<1x8x128xf32>,
    return
  }
  func.func @transform_0(%arg0: i32) -> (i32, i32) {
    %c0_i32 = arith.constant 0 : i32
    %c0_i32_0 = arith.constant 0 : i32
    return %arg0, %c0_i32 : i32, i32
  }
  func.func @transform_1(%arg0: i32) -> (i32, i32) {
    %c0_i32 = arith.constant 0 : i32
    %c0_i32_0 = arith.constant 0 : i32
    %c0_i32_1 = arith.constant 0 : i32
    return %c0_i32, %c0_i32_0 : i32, i32
  }
  func.func @transform_2(%arg0: i32) -> (i32, i32) {
    %c0_i32 = arith.constant 0 : i32
    %c0_i32_0 = arith.constant 0 : i32
    return %arg0, %c0_i32 : i32, i32
  }
  func.func @transform_3(%arg0: i32) -> (i32, i32, i32) {
    %c0_i32 = arith.constant 0 : i32
    %c0_i32_0 = arith.constant 0 : i32
    %c0_i32_1 = arith.constant 0 : i32
    return %arg0, %c0_i32, %c0_i32_0 : i32, i32, i32
  }
}

module attributes {stable_mosaic.version = 11 : i64} {
  func.func @_affine_lrelu_kernel(%arg0: i32, %arg1: memref<32x128xf32, #tpu.memory_space<vmem>>, %arg2: memref<1x128xf32, #tpu.memory_space<vmem>>, %arg3: memref<1x128xf32, #tpu.memory_space<vmem>>, %arg4: memref<32x128xf32, #tpu.memory_space<vmem>>) attributes {dimension_semantics = [#tpu.dimension_semantics<parallel>], iteration_bounds = array<i64: 1>, scalar_prefetch = 0 : i64, scratch_operands = 0 : i64, tpu.core_type = #tpu.core_type<tc>, window_params = [{transform_indices = @transform_0, window_bounds = array<i64: 32, 128>}, {pipeline_mode = #tpu.pipeline_mode<synchronous>, transform_indices = @transform_1, window_bounds = array<i64: 1, 128>}, {pipeline_mode = #tpu.pipeline_mode<synchronous>, transform_indices = @transform_2, window_bounds = array<i64: 1, 128>}, {transform_indices = @transform_3, window_bounds = array<i64: 32, 128>}]} {
    %c0 = arith.constant 0 : index
    %c0_0 = arith.constant 0 : index
    %0 = vector.load %arg1[%c0, %c0_0] : memref<32x128xf32, #tpu.memory_space<vmem>>, vector<32x128xf32>
    %c0_1 = arith.constant 0 : index
    %c0_2 = arith.constant 0 : index
    %1 = vector.load %arg2[%c0_1, %c0_2] : memref<1x128xf32, #tpu.memory_space<vmem>>, vector<1x128xf32>
    %2 = vector.broadcast %1 : vector<1x128xf32> to vector<32x128xf32>
    %3 = arith.mulf %0, %2 : vector<32x128xf32>
    %c0_3 = arith.constant 0 : index
    %c0_4 = arith.constant 0 : index
    %4 = vector.load %arg3[%c0_3, %c0_4] : memref<1x128xf32, #tpu.memory_space<vmem>>, vector<1x128xf32>
    %5 = vector.broadcast %4 : vector<1x128xf32> to vector<32x128xf32>
    %6 = arith.addf %3, %5 : vector<32x128xf32>
    %cst = arith.constant 0.000000e+00 : f32
    %7 = vector.broadcast %cst : f32 to vector<32x128xf32>
    %8 = arith.cmpf oge, %6, %7 : vector<32x128xf32>
    %cst_5 = arith.constant 0.00999999977 : f32
    %9 = vector.broadcast %cst_5 : f32 to vector<32x128xf32>
    %10 = arith.mulf %9, %6 : vector<32x128xf32>
    %11 = arith.select %8, %6, %10 : vector<32x128xi1>, vector<32x128xf32>
    %c0_6 = arith.constant 0 : index
    %c0_7 = arith.constant 0 : index
    %12 = vector.load %arg4[%c0_6, %c0_7] : memref<32x128xf32, #tpu.memory_space<vmem>>, vector<32x128xf32>
    tpu.vector_store %arg4[%c0_6, %c0_7], %11 {strides = array<i32>} : memref<32x128xf32, #tpu.memory_space<vmem>>, vector<32x128xf32>,
    return
  }
  func.func @transform_0(%arg0: i32) -> (i32, i32) {
    %c0_i32 = arith.constant 0 : i32
    %c0_i32_0 = arith.constant 0 : i32
    return %arg0, %c0_i32 : i32, i32
  }
  func.func @transform_1(%arg0: i32) -> (i32, i32) {
    %c0_i32 = arith.constant 0 : i32
    %c0_i32_0 = arith.constant 0 : i32
    %c0_i32_1 = arith.constant 0 : i32
    return %c0_i32, %c0_i32_0 : i32, i32
  }
  func.func @transform_2(%arg0: i32) -> (i32, i32) {
    %c0_i32 = arith.constant 0 : i32
    %c0_i32_0 = arith.constant 0 : i32
    %c0_i32_1 = arith.constant 0 : i32
    return %c0_i32, %c0_i32_0 : i32, i32
  }
  func.func @transform_3(%arg0: i32) -> (i32, i32) {
    %c0_i32 = arith.constant 0 : i32
    %c0_i32_0 = arith.constant 0 : i32
    return %arg0, %c0_i32 : i32, i32
  }
}

</mosaic_0001>

<llo_original>
// kernel: conv_downsample_forward.5
$region0: #{conv_downsample_forward.5}
  #allocation0 [shape = 'u32[]', space=smem, size = 0x4, offset = 0x4, fixed_abs, tag = 'smem constant byte address 0x4 - core index']
  #allocation1 [shape = 'u32[144,128]{1,0:T(1,128)}', space=vmem, size = 0x12000, scoped, tag = 'internal scratch']
  %s0 = inlined_call_operand.vmem [shape: f32[128,128], index: 0, kind: input, shape index: {}]
  %s1 = inlined_call_operand.vmem [shape: f32[1,128], index: 1, kind: input, shape index: {}]
  %s2 = inlined_call_operand.vmem [shape: f32[1,128], index: 2, kind: input, shape index: {}]
  %s3 = inlined_call_operand.vmem [shape: bf16[128,128], index: 3, kind: output, shape index: {}]
  %s4 = sld [smem:[#allocation0]]
  $region45: #{conv_downsample_forward.5} parent=0
    _
  %s6 = ssub.s32 1, %s4
  %s7 = scalar_select 0, %s6, %s4
  loop: start=0, step=1, limit=4
  $region2: #{conv_downsample_forward.5} parent=0 // loop_pre_header
    _
  $region3: #{conv_downsample_forward.5} parent=0 // loop_header
    %s9 = sphi 0, %s13
    %p10 = scmp.ge.s32.totalorder %s9, 4
    %s19 = sphi 0, %s21
    %s22 = sphi 0, %s19
    %s23 = sphi 0, %s22
    %s39 = sphi 0, %s23
    %s43 = sphi 0, %s43
    %s45 = sphi 0, %s43
    %s46 = sphi 0, %s45
    %s60 = sphi 0, %s46
    %s64 = sphi 0, %s64
    %s66 = sphi 0, %s64
    %s67 = sphi 0, %s66
    %s81 = sphi 0, %s67
    %s87 = sphi 0, %s89
    %s90 = sphi 0, %s87
    %s91 = sphi 0, %s90
    %s107 = sphi 0, %s91
  $region4: #{conv_downsample_forward.5} parent=0 // loop_header_branch
    %12 = sbr.rel (%p10) target = $region8
  $region5: #{conv_downsample_forward.5} parent=0 // loop_body
    %s14 = ssub.s32 %s9, 1
    %s15 = ssub.s32 %s9, 2
    %s16 = sadd.s32 %s9, 1
    %s17 = ssub.s32 %s9, %s16
    %p18 = scmp.eq.s32.totalorder %s17, 0
    %s20 = sadd.s32 %s19, 1
    %s21 = scalar_select %p18, %s19, %s20
    %p24 = pneg %p18
    %p25 = scmp.eq.s32.totalorder %s9, 1
    %p26 = por %p24, %p25
    %p27 = scmp.ne.s32.totalorder %s19, %s22
    %p28 = scmp.eq.s32.totalorder %s9, 0
    %p29 = por %p27, %p28
    %p30 = scmp.ne.s32.totalorder %s19, %s22
    %p31 = scmp.eq.s32.totalorder %s14, 1
    %p32 = por %p30, %p31
    %p33 = scmp.ne.s32.totalorder %s22, %s23
    %p34 = scmp.eq.s32.totalorder %s14, 0
    %p35 = por %p33, %p34
    %p36 = scmp.ne.s32.totalorder %s22, %s23
    %p37 = scmp.eq.s32.totalorder %s15, 1
    %p38 = por %p36, %p37
    %p40 = scmp.ne.s32.totalorder %s23, %s39
    %p41 = scmp.eq.s32.totalorder %s15, 0
    %p42 = por %p40, %p41
    %s44 = sadd.s32 %s43, 1
    %p47 = scmp.eq.s32.totalorder %s9, 1
    %p48 = scmp.ne.s32.totalorder %s43, %s45
    %p49 = scmp.eq.s32.totalorder %s9, 0
    %p50 = por %p48, %p49
    %p51 = scmp.ne.s32.totalorder %s43, %s45
    %p52 = scmp.eq.s32.totalorder %s14, 1
    %p53 = por %p51, %p52
    %p54 = scmp.ne.s32.totalorder %s45, %s46
    %p55 = scmp.eq.s32.totalorder %s14, 0
    %p56 = por %p54, %p55
    %p57 = scmp.ne.s32.totalorder %s45, %s46
    %p58 = scmp.eq.s32.totalorder %s15, 1
    %p59 = por %p57, %p58
    %p61 = scmp.ne.s32.totalorder %s46, %s60
    %p62 = scmp.eq.s32.totalorder %s15, 0
    %p63 = por %p61, %p62
    %s65 = sadd.s32 %s64, 1
    %p68 = scmp.eq.s32.totalorder %s9, 1
    %p69 = scmp.ne.s32.totalorder %s64, %s66
    %p70 = scmp.eq.s32.totalorder %s9, 0
    %p71 = por %p69, %p70
    %p72 = scmp.ne.s32.totalorder %s64, %s66
    %p73 = scmp.eq.s32.totalorder %s14, 1
    %p74 = por %p72, %p73
    %p75 = scmp.ne.s32.totalorder %s66, %s67
    %p76 = scmp.eq.s32.totalorder %s14, 0
    %p77 = por %p75, %p76
    %p78 = scmp.ne.s32.totalorder %s66, %s67
    %p79 = scmp.eq.s32.totalorder %s15, 1
    %p80 = por %p78, %p79
    %p82 = scmp.ne.s32.totalorder %s67, %s81
    %p83 = scmp.eq.s32.totalorder %s15, 0
    %p84 = por %p82, %p83
    %s85 = ssub.s32 %s9, %s16
    %p86 = scmp.eq.s32.totalorder %s85, 0
    %s88 = sadd.s32 %s87, 1
    %s89 = scalar_select %p86, %s87, %s88
    %p92 = pneg %p86
    %p93 = scmp.eq.s32.totalorder %s9, 1
    %p94 = por %p92, %p93
    %p95 = scmp.ne.s32.totalorder %s87, %s90
    %p96 = scmp.eq.s32.totalorder %s9, 0
    %p97 = por %p95, %p96
    %p98 = scmp.ne.s32.totalorder %s87, %s90
    %p99 = scmp.eq.s32.totalorder %s14, 1
    %p100 = por %p98, %p99
    %p101 = scmp.ne.s32.totalorder %s90, %s91
    %p102 = scmp.eq.s32.totalorder %s14, 0
    %p103 = por %p101, %p102
    %p104 = scmp.ne.s32.totalorder %s90, %s91
    %p105 = scmp.eq.s32.totalorder %s15, 1
    %p106 = por %p104, %p105
    %p108 = scmp.ne.s32.totalorder %s91, %s107
    %p109 = scmp.eq.s32.totalorder %s15, 0
    %p110 = por %p108, %p109
    %p111 = scmp.le.s32.totalorder 1, %s9
    %p112 = scmp.lt.s32.totalorder %s9, 3
    %p113 = pnand %p111, %p112
    %p114 = pneg %p113
    // Predicated region
    $region9: #{conv_downsample_forward.5} parent=5 // pred_check
      _
    $region10: #{conv_downsample_forward.5} parent=5 // pred_check_branch
      %116 = sbr.rel (%p113) target = $region12
    $region11: #{conv_downsample_forward.5} parent=5 // pred_region
      %s117 = ssub.s32 %s9, 1
      // Predicated region
      $region13: #{conv_downsample_forward.5} parent=11 // pred_check
        %p118 = pneg %p56
      $region14: #{conv_downsample_forward.5} parent=11 // pred_check_branch
        %120 = sbr.rel (%p118) target = $region16
      $region15: #{conv_downsample_forward.5} parent=11 // pred_region
        _
      $region16: #{conv_downsample_forward.5} parent=11 // pred_fallthru
        _
      // Predicated region
      $region17: #{conv_downsample_forward.5} parent=11 // pred_check
        %p121 = pneg %p77
      $region18: #{conv_downsample_forward.5} parent=11 // pred_check_branch
        %123 = sbr.rel (%p121) target = $region20
      $region19: #{conv_downsample_forward.5} parent=11 // pred_region
        _
      $region20: #{conv_downsample_forward.5} parent=11 // pred_fallthru
        _
    $region12: #{conv_downsample_forward.5} parent=5 // pred_fallthru
      _
    %p124 = scmp.lt.s32.totalorder %s9, 2
    // Predicated region
    $region21: #{conv_downsample_forward.5} parent=5 // pred_check
      %p125 = pneg %p124
    $region22: #{conv_downsample_forward.5} parent=5 // pred_check_branch
      %127 = sbr.rel (%p125) target = $region24
    $region23: #{conv_downsample_forward.5} parent=5 // pred_region
      // Predicated region
      $region25: #{conv_downsample_forward.5} parent=23 // pred_check
        %p128 = pneg %p29
      $region26: #{conv_downsample_forward.5} parent=23 // pred_check_branch
        %130 = sbr.rel (%p128) target = $region28
      $region27: #{conv_downsample_forward.5} parent=23 // pred_region
        %s131 = smul.u32 8, %s9
        %p132 = scmp.lt.s32.totalorder %s131, 15
        %s133 = scalar_select %p132, %s131, 15
        %s134 = smul.addr %s133, 8
        %s135 = scalar_lea.vmem %s0, %s134
        %s136 = smul.u32 8, %s9
      $region28: #{conv_downsample_forward.5} parent=23 // pred_fallthru
        _
    $region24: #{conv_downsample_forward.5} parent=5 // pred_fallthru
      _
    %p137 = scmp.le.s32.totalorder 1, %s9
    %p138 = scmp.lt.s32.totalorder %s9, 3
    %p139 = pnand %p137, %p138
    %p140 = pneg %p139
    // Predicated region
    $region29: #{conv_downsample_forward.5} parent=5 // pred_check
      _
    $region30: #{conv_downsample_forward.5} parent=5 // pred_check_branch
      %142 = sbr.rel (%p139) target = $region32
    $region31: #{conv_downsample_forward.5} parent=5 // pred_region
      %s143 = ssub.s32 %s9, 1
      %s144 = smul.u32 8, %s14
      %p145 = scmp.lt.s32.totalorder %s144, 15
      %s146 = scalar_select %p145, %s144, 15
      %s147 = smul.addr %s146, 8
      %s148 = scalar_lea.vmem %s0, %s147
      %p149 = pneg %p35
      %p150 = pneg %p32
      %p151 = pneg %p56
      %p152 = pneg %p53
      %p153 = pneg %p77
      %p154 = pneg %p74
      %p155 = pneg %p103
      %p156 = pneg %p100
      %s157 = smul.u32 8, %s14
      %p158 = scmp.lt.s32.totalorder %s157, 15
      %s159 = scalar_select %p158, %s157, 15
      %s160 = smul.addr %s159, 4
      %s161 = scalar_lea.vmem %s3, %s160
      %s162 = smul.u32 8, %s14
      %p163 = scmp.lt.s32.totalorder %s162, 15
      %s164 = scalar_select %p163, %s162, 15
      %s165 = smul.addr %s164, 8
      %s166 = scalar_lea.vmem %s0, %s165
      %s167 = smul.u32 8, %s14
      %s168 = smul.u32 8, %s14
      %p169 = scmp.lt.s32.totalorder %s168, 15
      %s170 = scalar_select %p169, %s168, 15
      %s171 = smul.addr %s170, 4
      %s172 = scalar_lea.vmem %s3, %s171
      %s173 = smul.u32 8, %s14
      %v174 = vld [vmem:[%s166] sm:$0xff]
      %v175 = vld [vmem:[%s166 + $0x8] sm:$0xff]
      %v176 = vld [vmem:[%s166 + $0x10] sm:$0xff]
      %v177 = vld [vmem:[%s166 + $0x18] sm:$0xff]
      %v178 = vld [vmem:[%s166 + $0x20] sm:$0xff]
      %v179 = vld [vmem:[%s166 + $0x28] sm:$0xff]
      %v180 = vld [vmem:[%s166 + $0x30] sm:$0xff]
      %v181 = vld [vmem:[%s166 + $0x38] sm:$0xff]
      %v182 = vld [vmem:[%s1] sm:$0x1]
      %v184 = vlaneseq
      %v185 = vshrl.u32 %v184, 7
      %v186 = vsub.s32 0, %v185
      %v187 = vrot.slane %v182, %v186
      %v189 = vmul.f32 %v174, %v187
      %v190 = vmul.f32 %v175, %v187
      %v191 = vmul.f32 %v176, %v187
      %v192 = vmul.f32 %v177, %v187
      %v193 = vmul.f32 %v178, %v187
      %v194 = vmul.f32 %v179, %v187
      %v195 = vmul.f32 %v180, %v187
      %v196 = vmul.f32 %v181, %v187
      %v197 = vld [vmem:[%s2] sm:$0x1]
      %v199 = vlaneseq
      %v200 = vshrl.u32 %v199, 7
      %v201 = vsub.s32 0, %v200
      %v202 = vrot.slane %v197, %v201
      %v204 = vadd.f32 %v189, %v202
      %v205 = vadd.f32 %v190, %v202
      %v206 = vadd.f32 %v191, %v202
      %v207 = vadd.f32 %v192, %v202
      %v208 = vadd.f32 %v193, %v202
      %v209 = vadd.f32 %v194, %v202
      %v210 = vadd.f32 %v195, %v202
      %v211 = vadd.f32 %v196, %v202
      %vm212 = vcmp.ge.f32.partialorder %v204, 0.0
      %vm213 = vcmp.ge.f32.partialorder %v205, 0.0
      %vm214 = vcmp.ge.f32.partialorder %v206, 0.0
      %vm215 = vcmp.ge.f32.partialorder %v207, 0.0
      %vm216 = vcmp.ge.f32.partialorder %v208, 0.0
      %vm217 = vcmp.ge.f32.partialorder %v209, 0.0
      %vm218 = vcmp.ge.f32.partialorder %v210, 0.0
      %vm219 = vcmp.ge.f32.partialorder %v211, 0.0
      %v220 = vmul.f32 %v204, 0.01
      %v221 = vmul.f32 %v205, 0.01
      %v222 = vmul.f32 %v206, 0.01
      %v223 = vmul.f32 %v207, 0.01
      %v224 = vmul.f32 %v208, 0.01
      %v225 = vmul.f32 %v209, 0.01
      %v226 = vmul.f32 %v210, 0.01
      %v227 = vmul.f32 %v211, 0.01
      %v228 = vsel %vm212, %v204, %v220
      %v229 = vsel %vm213, %v205, %v221
      %v230 = vsel %vm214, %v206, %v222
      %v231 = vsel %vm215, %v207, %v223
      %v232 = vsel %vm216, %v208, %v224
      %v233 = vsel %vm217, %v209, %v225
      %v234 = vsel %vm218, %v210, %v226
      %v235 = vsel %vm219, %v211, %v227
      %v236 = vpack.c.bf16 %v229, %v228
      %v237 = vpack.c.bf16 %v231, %v230
      %v238 = vpack.c.bf16 %v233, %v232
      %v239 = vpack.c.bf16 %v235, %v234
      %v244 = vunpack.c.l.b16 %v236
      %v245 = vunpack.c.h.b16 %v236
      %v246 = vunpack.c.l.b16 %v237
      %v247 = vunpack.c.h.b16 %v237
      %v248 = vunpack.c.l.b16 %v238
      %v249 = vunpack.c.h.b16 %v238
      %v250 = vunpack.c.l.b16 %v239
      %v251 = vunpack.c.h.b16 %v239
      %v252 = vpack.c.b16 %v244, %v244
      %v253 = vpack.c.b16 %v245, %v245
      %v254 = vpack.c.b16 %v246, %v246
      %v255 = vpack.c.b16 %v247, %v247
      %v256 = vpack.c.b16 %v248, %v248
      %v257 = vpack.c.b16 %v249, %v249
      %v258 = vpack.c.b16 %v250, %v250
      %v259 = vpack.c.b16 %v251, %v251
      %268 = vst [vmem:[%s172] sm:$0xf] %v252
      %269 = vst [vmem:[%s172 + $0x4] sm:$0xf] %v253
      %270 = vst [vmem:[%s172 + $0x8] sm:$0xf] %v254
      %271 = vst [vmem:[%s172 + $0xc] sm:$0xf] %v255
      %272 = vst [vmem:[%s172 + $0x10] sm:$0xf] %v256
      %273 = vst [vmem:[%s172 + $0x14] sm:$0xf] %v257
      %274 = vst [vmem:[%s172 + $0x18] sm:$0xf] %v258
      %275 = vst [vmem:[%s172 + $0x1c] sm:$0xf] %v259
      %s276 = smul.u32 8, %s14
      %p277 = scmp.lt.s32.totalorder %s276, 15
      %s278 = scalar_select %p277, %s276, 15
      %s279 = smul.addr %s278, 4
      %s280 = scalar_lea.vmem %s3, %s279
      // Predicated region
      $region33: #{conv_downsample_forward.5} parent=31 // pred_check
        %p281 = pneg %p100
      $region34: #{conv_downsample_forward.5} parent=31 // pred_check_branch
        %283 = sbr.rel (%p281) target = $region36
      $region35: #{conv_downsample_forward.5} parent=31 // pred_region
        %s284 = smul.u32 8, %s14
      $region36: #{conv_downsample_forward.5} parent=31 // pred_fallthru
        _
    $region32: #{conv_downsample_forward.5} parent=5 // pred_fallthru
      _
    %p285 = scmp.le.s32.totalorder 2, %s9
    // Predicated region
    $region37: #{conv_downsample_forward.5} parent=5 // pred_check
      %p286 = pneg %p285
    $region38: #{conv_downsample_forward.5} parent=5 // pred_check_branch
      %288 = sbr.rel (%p286) target = $region40
    $region39: #{conv_downsample_forward.5} parent=5 // pred_region
      %s289 = ssub.s32 %s9, 2
      // Predicated region
      $region41: #{conv_downsample_forward.5} parent=39 // pred_check
        %p290 = pneg %p106
      $region42: #{conv_downsample_forward.5} parent=39 // pred_check_branch
        %292 = sbr.rel (%p290) target = $region44
      $region43: #{conv_downsample_forward.5} parent=39 // pred_region
        %s293 = smul.u32 8, %s15
        %p294 = scmp.lt.s32.totalorder %s293, 15
        %s295 = scalar_select %p294, %s293, 15
        %s296 = smul.addr %s295, 4
        %s297 = scalar_lea.vmem %s3, %s296
      $region44: #{conv_downsample_forward.5} parent=39 // pred_fallthru
        _
    $region40: #{conv_downsample_forward.5} parent=5 // pred_fallthru
      _
  $region6: #{conv_downsample_forward.5} parent=0 // loop_footer
    %s13 = sadd.s32 1, %s9
  $region7: #{conv_downsample_forward.5} parent=0 // loop_footer_branch
    %8 = sbr.rel target = $region3
  $region8: #{conv_downsample_forward.5} parent=0 // loop_exit
    _

// kernel: conv_downsample_forward.4
$region0: #{conv_downsample_forward.4}
  #allocation0 [shape = 'u32[]', space=smem, size = 0x4, offset = 0x4, fixed_abs, tag = 'smem constant byte address 0x4 - core index']
  #allocation1 [shape = 'u32[144,128]{1,0:T(1,128)}', space=vmem, size = 0x12000, scoped, tag = 'internal scratch']
  %s0 = inlined_call_operand.vmem [shape: bf16[128,36], index: 0, kind: input, shape index: {}]
  %s1 = inlined_call_operand.vmem [shape: bf16[36,128], index: 1, kind: input, shape index: {}]
  %s2 = inlined_call_operand.vmem [shape: f32[128,128], index: 2, kind: output, shape index: {0}]
  %s3 = inlined_call_operand.vmem [shape: f32[2,8,128], index: 3, kind: output, shape index: {1}]
  %4 = xla_tuple %s2, %s3
  %s5 = sld [smem:[#allocation0]]
  $region49: #{conv_downsample_forward.4} parent=0
    _
  %s7 = ssub.s32 1, %s5
  %s8 = scalar_select 0, %s7, %s5
  loop: start=0, step=1, limit=4
  $region2: #{conv_downsample_forward.4} parent=0 // loop_pre_header
    _
  $region3: #{conv_downsample_forward.4} parent=0 // loop_header
    %s10 = sphi 0, %s14
    %p11 = scmp.ge.s32.totalorder %s10, 4
    %s20 = sphi 0, %s22
    %s23 = sphi 0, %s20
    %s24 = sphi 0, %s23
    %s40 = sphi 0, %s24
    %s44 = sphi 0, %s44
    %s46 = sphi 0, %s44
    %s47 = sphi 0, %s46
    %s61 = sphi 0, %s47
    %s67 = sphi 0, %s69
    %s70 = sphi 0, %s67
    %s71 = sphi 0, %s70
    %s87 = sphi 0, %s71
    %s93 = sphi 0, %s95
    %s96 = sphi 0, %s93
    %s97 = sphi 0, %s96
    %s113 = sphi 0, %s97
  $region4: #{conv_downsample_forward.4} parent=0 // loop_header_branch
    %13 = sbr.rel (%p11) target = $region8
  $region5: #{conv_downsample_forward.4} parent=0 // loop_body
    %s15 = ssub.s32 %s10, 1
    %s16 = ssub.s32 %s10, 2
    %s17 = sadd.s32 %s10, 1
    %s18 = ssub.s32 %s10, %s17
    %p19 = scmp.eq.s32.totalorder %s18, 0
    %s21 = sadd.s32 %s20, 1
    %s22 = scalar_select %p19, %s20, %s21
    %p25 = pneg %p19
    %p26 = scmp.eq.s32.totalorder %s10, 1
    %p27 = por %p25, %p26
    %p28 = scmp.ne.s32.totalorder %s20, %s23
    %p29 = scmp.eq.s32.totalorder %s10, 0
    %p30 = por %p28, %p29
    %p31 = scmp.ne.s32.totalorder %s20, %s23
    %p32 = scmp.eq.s32.totalorder %s15, 1
    %p33 = por %p31, %p32
    %p34 = scmp.ne.s32.totalorder %s23, %s24
    %p35 = scmp.eq.s32.totalorder %s15, 0
    %p36 = por %p34, %p35
    %p37 = scmp.ne.s32.totalorder %s23, %s24
    %p38 = scmp.eq.s32.totalorder %s16, 1
    %p39 = por %p37, %p38
    %p41 = scmp.ne.s32.totalorder %s24, %s40
    %p42 = scmp.eq.s32.totalorder %s16, 0
    %p43 = por %p41, %p42
    %s45 = sadd.s32 %s44, 1
    %p48 = scmp.eq.s32.totalorder %s10, 1
    %p49 = scmp.ne.s32.totalorder %s44, %s46
    %p50 = scmp.eq.s32.totalorder %s10, 0
    %p51 = por %p49, %p50
    %p52 = scmp.ne.s32.totalorder %s44, %s46
    %p53 = scmp.eq.s32.totalorder %s15, 1
    %p54 = por %p52, %p53
    %p55 = scmp.ne.s32.totalorder %s46, %s47
    %p56 = scmp.eq.s32.totalorder %s15, 0
    %p57 = por %p55, %p56
    %p58 = scmp.ne.s32.totalorder %s46, %s47
    %p59 = scmp.eq.s32.totalorder %s16, 1
    %p60 = por %p58, %p59
    %p62 = scmp.ne.s32.totalorder %s47, %s61
    %p63 = scmp.eq.s32.totalorder %s16, 0
    %p64 = por %p62, %p63
    %s65 = ssub.s32 %s10, %s17
    %p66 = scmp.eq.s32.totalorder %s65, 0
    %s68 = sadd.s32 %s67, 1
    %s69 = scalar_select %p66, %s67, %s68
    %p72 = pneg %p66
    %p73 = scmp.eq.s32.totalorder %s10, 1
    %p74 = por %p72, %p73
    %p75 = scmp.ne.s32.totalorder %s67, %s70
    %p76 = scmp.eq.s32.totalorder %s10, 0
    %p77 = por %p75, %p76
    %p78 = scmp.ne.s32.totalorder %s67, %s70
    %p79 = scmp.eq.s32.totalorder %s15, 1
    %p80 = por %p78, %p79
    %p81 = scmp.ne.s32.totalorder %s70, %s71
    %p82 = scmp.eq.s32.totalorder %s15, 0
    %p83 = por %p81, %p82
    %p84 = scmp.ne.s32.totalorder %s70, %s71
    %p85 = scmp.eq.s32.totalorder %s16, 1
    %p86 = por %p84, %p85
    %p88 = scmp.ne.s32.totalorder %s71, %s87
    %p89 = scmp.eq.s32.totalorder %s16, 0
    %p90 = por %p88, %p89
    %s91 = ssub.s32 %s10, %s17
    %p92 = scmp.eq.s32.totalorder %s91, 0
    %s94 = sadd.s32 %s93, 1
    %s95 = scalar_select %p92, %s93, %s94
    %p98 = pneg %p92
    %p99 = scmp.eq.s32.totalorder %s10, 1
    %p100 = por %p98, %p99
    %p101 = scmp.ne.s32.totalorder %s93, %s96
    %p102 = scmp.eq.s32.totalorder %s10, 0
    %p103 = por %p101, %p102
    %p104 = scmp.ne.s32.totalorder %s93, %s96
    %p105 = scmp.eq.s32.totalorder %s15, 1
    %p106 = por %p104, %p105
    %p107 = scmp.ne.s32.totalorder %s96, %s97
    %p108 = scmp.eq.s32.totalorder %s15, 0
    %p109 = por %p107, %p108
    %p110 = scmp.ne.s32.totalorder %s96, %s97
    %p111 = scmp.eq.s32.totalorder %s16, 1
    %p112 = por %p110, %p111
    %p114 = scmp.ne.s32.totalorder %s97, %s113
    %p115 = scmp.eq.s32.totalorder %s16, 0
    %p116 = por %p114, %p115
    %p117 = scmp.le.s32.totalorder 1, %s10
    %p118 = scmp.lt.s32.totalorder %s10, 3
    %p119 = pnand %p117, %p118
    %p120 = pneg %p119
    // Predicated region
    $region9: #{conv_downsample_forward.4} parent=5 // pred_check
      _
    $region10: #{conv_downsample_forward.4} parent=5 // pred_check_branch
      %122 = sbr.rel (%p119) target = $region12
    $region11: #{conv_downsample_forward.4} parent=5 // pred_region
      %s123 = ssub.s32 %s10, 1
      // Predicated region
      $region13: #{conv_downsample_forward.4} parent=11 // pred_check
        %p124 = pneg %p57
      $region14: #{conv_downsample_forward.4} parent=11 // pred_check_branch
        %126 = sbr.rel (%p124) target = $region16
      $region15: #{conv_downsample_forward.4} parent=11 // pred_region
        _
      $region16: #{conv_downsample_forward.4} parent=11 // pred_fallthru
        _
    $region12: #{conv_downsample_forward.4} parent=5 // pred_fallthru
      _
    %p127 = scmp.lt.s32.totalorder %s10, 2
    // Predicated region
    $region17: #{conv_downsample_forward.4} parent=5 // pred_check
      %p128 = pneg %p127
    $region18: #{conv_downsample_forward.4} parent=5 // pred_check_branch
      %130 = sbr.rel (%p128) target = $region20
    $region19: #{conv_downsample_forward.4} parent=5 // pred_region
      // Predicated region
      $region21: #{conv_downsample_forward.4} parent=19 // pred_check
        %p131 = pneg %p30
      $region22: #{conv_downsample_forward.4} parent=19 // pred_check_branch
        %133 = sbr.rel (%p131) target = $region24
      $region23: #{conv_downsample_forward.4} parent=19 // pred_region
        %s134 = smul.u32 8, %s10
        %p135 = scmp.lt.s32.totalorder %s134, 15
        %s136 = scalar_select %p135, %s134, 15
        %s137 = smul.addr %s136, 4
        %s138 = scalar_lea.vmem %s0, %s137
        %s139 = smul.u32 8, %s10
      $region24: #{conv_downsample_forward.4} parent=19 // pred_fallthru
        _
    $region20: #{conv_downsample_forward.4} parent=5 // pred_fallthru
      _
    %p140 = scmp.le.s32.totalorder 1, %s10
    %p141 = scmp.lt.s32.totalorder %s10, 3
    %p142 = pnand %p140, %p141
    %p143 = pneg %p142
    // Predicated region
    $region25: #{conv_downsample_forward.4} parent=5 // pred_check
      _
    $region26: #{conv_downsample_forward.4} parent=5 // pred_check_branch
      %145 = sbr.rel (%p142) target = $region28
    $region27: #{conv_downsample_forward.4} parent=5 // pred_region
      %s146 = ssub.s32 %s10, 1
      %s147 = smul.u32 8, %s15
      %p148 = scmp.lt.s32.totalorder %s147, 15
      %s149 = scalar_select %p148, %s147, 15
      %s150 = smul.addr %s149, 4
      %s151 = scalar_lea.vmem %s0, %s150
      %p152 = pneg %p36
      %p153 = pneg %p33
      %p154 = pneg %p57
      %p155 = pneg %p54
      %p156 = pneg %p83
      %p157 = pneg %p80
      %s158 = smul.u32 8, %s15
      %p159 = scmp.lt.s32.totalorder %s158, 15
      %s160 = scalar_select %p159, %s158, 15
      %s161 = smul.addr %s160, 8
      %s162 = scalar_lea.vmem %s2, %s161
      %p163 = pneg %p109
      %p164 = pneg %p106
      %p165 = scmp.lt.s32.totalorder %s15, 1
      %s166 = scalar_select %p165, %s15, 1
      %s167 = smul.addr %s166, 8
      %s168 = scalar_lea.vmem %s3, %s167
      %s169 = smul.u32 8, %s15
      %p170 = scmp.lt.s32.totalorder %s169, 15
      %s171 = scalar_select %p170, %s169, 15
      %s172 = smul.addr %s171, 4
      %s173 = scalar_lea.vmem %s0, %s172
      %s174 = smul.u32 8, %s15
      %s175 = smul.u32 8, %s15
      %p176 = scmp.lt.s32.totalorder %s175, 15
      %s177 = scalar_select %p176, %s175, 15
      %s178 = smul.addr %s177, 8
      %s179 = scalar_lea.vmem %s2, %s178
      %s180 = smul.u32 8, %s15
      %p181 = scmp.lt.s32.totalorder %s15, 1
      %s182 = scalar_select %p181, %s15, 1
      %s183 = smul.addr %s182, 8
      %s184 = scalar_lea.vmem %s3, %s183
      %v186 = vld [vmem:[%s173] sm:$0xf]
      %v187 = vld [vmem:[%s173 + $0x4] sm:$0xf]
      %v188 = vld [vmem:[%s173 + $0x8] sm:$0xf]
      %v189 = vld [vmem:[%s173 + $0xc] sm:$0xf]
      %v190 = vld [vmem:[%s173 + $0x10] sm:$0xf]
      %v191 = vld [vmem:[%s173 + $0x14] sm:$0xf]
      %v192 = vld [vmem:[%s173 + $0x18] sm:$0xf]
      %v193 = vld [vmem:[%s173 + $0x1c] sm:$0xf]
      %v194 = vld [vmem:[%s1] sm:$0xf]
      %v195 = vld [vmem:[%s1 + $0x4] sm:$0xf]
      %v196 = vld [vmem:[%s1 + $0x8] sm:$0xf]
      %v197 = vld [vmem:[%s1 + $0xc] sm:$0xf]
      %v198 = vld [vmem:[%s1 + $0x10] sm:$0x3]
      %v207 = vunpack.c.l.b16 %v186
      %v208 = vunpack.c.l.b16 %v187
      %v209 = vunpack.c.l.b16 %v188
      %v210 = vunpack.c.l.b16 %v189
      %v211 = vunpack.c.l.b16 %v190
      %v212 = vunpack.c.l.b16 %v191
      %v213 = vunpack.c.l.b16 %v192
      %v214 = vunpack.c.l.b16 %v193
      %v215 = vpack.c.b16 %v208, %v207
      %v216 = vpack.c.b16 %v210, %v209
      %v217 = vpack.c.b16 %v212, %v211
      %v218 = vpack.c.b16 %v214, %v213
      %v224 = vunpack.c.l.b16 %v194
      %v225 = vunpack.c.l.b16 %v195
      %v226 = vunpack.c.l.b16 %v196
      %v227 = vunpack.c.l.b16 %v197
      %v228 = vunpack.c.l.b16 %v198
      %v229 = vpack.c.b16 %v225, %v224
      %v230 = vpack.c.b16 %v227, %v226
      %v231 = vpack.c.b16 %v228, %v228
      %vm234 = vcmask 293888
      %v236 = vsel %vm234, %v215, 0
      %v239 = vsel %vm234, %v216, 0
      %v242 = vsel %vm234, %v217, 0
      %v245 = vsel %vm234, %v218, 0
      %vm247 = vcmask 1041408
      %v249 = vsel %vm247, %v231, 0
      %251 = vmatprep.subr.bf16.mxu0 0
      %252 = vmatpush1.bf16.msra.mxu0 0
      %253 = vmatprep.subr.bf16.mxu0 0
      %254 = vmatpush1.bf16.msra.mxu0 0
      %255 = vmatprep.subr.bf16.mxu0 0
      %256 = vmatpush1.bf16.msra.mxu0 0
      %257 = vmatprep.subr.bf16.mxu0 0
      %258 = vmatpush1.bf16.msra.mxu0 0
      %259 = vmatprep.subr.bf16.mxu0 0
      %260 = vmatpush1.bf16.msra.mxu0 0
      %261 = vmatprep.subr.bf16.mxu0 0
      %262 = vmatpush1.bf16.msra.mxu0 %v249
      %263 = vmatprep.subr.bf16.mxu0 0
      %264 = vmatpush1.bf16.msra.mxu0 %v230
      %265 = vmatprep.subr.bf16.mxu0 0
      %266 = vmatpush1.bf16.msra.mxu0 %v229
      %267 = vmatprep.subr.bf16.mxu0 0
      %268 = vmatpush2.bf16.msra.mxu0 0
      %269 = vmatprep.subr.bf16.mxu0 0
      %270 = vmatpush2.bf16.msra.mxu0 0
      %271 = vmatprep.subr.bf16.mxu0 0
      %272 = vmatpush2.bf16.msra.mxu0 0
      %273 = vmatprep.subr.bf16.mxu0 0
      %274 = vmatpush2.bf16.msra.mxu0 0
      %275 = vmatprep.subr.bf16.mxu0 0
      %276 = vmatpush2.bf16.msra.mxu0 0
      %277 = vmatprep.subr.bf16.mxu0 0
      %278 = vmatpush2.bf16.msra.mxu0 0
      %279 = vmatprep.subr.bf16.mxu0 0
      %280 = vmatpush2.bf16.msra.mxu0 0
      %281 = vmatprep.subr.bf16.mxu0 0
      %282 = vmatpush2.bf16.msra.mxu0 0
      %283 = vmatprep.mubr.bf16.mxu0 0
      %284 = vmatmul.mubr.bf16.gmra.mxu0 %v236
      %v285 = vpop.f32.mrf.mxu0
      %v286 = vadd.f32 0.0, %v285
      %v287 = vpop.f32.mrf.mxu0
      %v288 = vpop.f32.mrf.mxu0
      %v289 = vadd.f32 0.0, %v288
      %v290 = vpop.f32.mrf.mxu0
      %291 = vmatprep.mubr.bf16.mxu0 0
      %292 = vmatmul.mubr.bf16.gmra.mxu0 %v239
      %v293 = vpop.f32.mrf.mxu0
      %v294 = vadd.f32 0.0, %v293
      %v295 = vpop.f32.mrf.mxu0
      %v296 = vpop.f32.mrf.mxu0
      %v297 = vadd.f32 0.0, %v296
      %v298 = vpop.f32.mrf.mxu0
      %299 = vmatprep.mubr.bf16.mxu0 0
      %300 = vmatmul.mubr.bf16.gmra.mxu0 %v242
      %v301 = vpop.f32.mrf.mxu0
      %v302 = vadd.f32 0.0, %v301
      %v303 = vpop.f32.mrf.mxu0
      %v304 = vpop.f32.mrf.mxu0
      %v305 = vadd.f32 0.0, %v304
      %v306 = vpop.f32.mrf.mxu0
      %307 = vmatprep.mubr.bf16.mxu0 0
      %308 = vmatmul.mubr.bf16.gmra.mxu0 %v245
      %v309 = vpop.f32.mrf.mxu0
      %v310 = vadd.f32 0.0, %v309
      %v311 = vpop.f32.mrf.mxu0
      %v312 = vpop.f32.mrf.mxu0
      %v313 = vadd.f32 0.0, %v312
      %v314 = vpop.f32.mrf.mxu0
      %315 = vdwg.mxu0
      %316 = vst [vmem:[%s179] sm:$0xff] %v286
      %317 = vst [vmem:[%s179 + $0x8] sm:$0xff] %v289
      %318 = vst [vmem:[%s179 + $0x10] sm:$0xff] %v294
      %319 = vst [vmem:[%s179 + $0x18] sm:$0xff] %v297
      %320 = vst [vmem:[%s179 + $0x20] sm:$0xff] %v302
      %321 = vst [vmem:[%s179 + $0x28] sm:$0xff] %v305
      %322 = vst [vmem:[%s179 + $0x30] sm:$0xff] %v310
      %323 = vst [vmem:[%s179 + $0x38] sm:$0xff] %v313
      %v324 = vadd.f32 %v286, %v289
      %v325 = vadd.f32 %v324, %v294
      %v326 = vadd.f32 %v325, %v297
      %v327 = vadd.f32 %v326, %v302
      %v328 = vadd.f32 %v327, %v305
      %v329 = vadd.f32 %v328, %v310
      %v330 = vadd.f32 %v329, %v313
      %v331 = vrot.slane %v330, 4
      %v332 = vadd.f32 %v330, %v331
      %v333 = vrot.slane %v332, 2
      %v334 = vadd.f32 %v332, %v333
      %v335 = vrot.slane %v334, 1
      %v336 = vadd.f32 %v334, %v335
      %v337 = vmul.f32 %v286, %v286
      %v338 = vmul.f32 %v289, %v289
      %v339 = vmul.f32 %v294, %v294
      %v340 = vmul.f32 %v297, %v297
      %v341 = vmul.f32 %v302, %v302
      %v342 = vmul.f32 %v305, %v305
      %v343 = vmul.f32 %v310, %v310
      %v344 = vmul.f32 %v313, %v313
      %v345 = vadd.f32 %v337, %v338
      %v346 = vadd.f32 %v345, %v339
      %v347 = vadd.f32 %v346, %v340
      %v348 = vadd.f32 %v347, %v341
      %v349 = vadd.f32 %v348, %v342
      %v350 = vadd.f32 %v349, %v343
      %v351 = vadd.f32 %v350, %v344
      %v352 = vrot.slane %v351, 4
      %v353 = vadd.f32 %v351, %v352
      %v354 = vrot.slane %v353, 2
      %v355 = vadd.f32 %v353, %v354
      %v356 = vrot.slane %v355, 1
      %v357 = vadd.f32 %v355, %v356
      %v358 = vlaneseq
      %v359 = vshrl.u32 %v358, 7
      %vm360 = vcmp.eq.s32.totalorder %v359, 0
      %vm361 = vcmp.eq.s32.totalorder %v359, 1
      %v362 = vsel %vm361, %v357, 0.0
      %v363 = vsel %vm360, %v336, %v362
      %364 = vst [vmem:[%s184] sm:$0xff] %v363
      %s365 = smul.u32 8, %s15
      %p366 = scmp.lt.s32.totalorder %s365, 15
      %s367 = scalar_select %p366, %s365, 15
      %s368 = smul.addr %s367, 8
      %s369 = scalar_lea.vmem %s2, %s368
      %p370 = scmp.lt.s32.totalorder %s15, 1
      %s371 = scalar_select %p370, %s15, 1
      %s372 = smul.addr %s371, 8
      %s373 = scalar_lea.vmem %s3, %s372
      // Predicated region
      $region29: #{conv_downsample_forward.4} parent=27 // pred_check
        %p374 = pneg %p80
      $region30: #{conv_downsample_forward.4} parent=27 // pred_check_branch
        %376 = sbr.rel (%p374) target = $region32
      $region31: #{conv_downsample_forward.4} parent=27 // pred_region
        %s377 = smul.u32 8, %s15
      $region32: #{conv_downsample_forward.4} parent=27 // pred_fallthru
        _
      // Predicated region
      $region33: #{conv_downsample_forward.4} parent=27 // pred_check
        %p378 = pneg %p106
      $region34: #{conv_downsample_forward.4} parent=27 // pred_check_branch
        %380 = sbr.rel (%p378) target = $region36
      $region35: #{conv_downsample_forward.4} parent=27 // pred_region
        _
      $region36: #{conv_downsample_forward.4} parent=27 // pred_fallthru
        _
    $region28: #{conv_downsample_forward.4} parent=5 // pred_fallthru
      _
    %p381 = scmp.le.s32.totalorder 2, %s10
    // Predicated region
    $region37: #{conv_downsample_forward.4} parent=5 // pred_check
      %p382 = pneg %p381
    $region38: #{conv_downsample_forward.4} parent=5 // pred_check_branch
      %384 = sbr.rel (%p382) target = $region40
    $region39: #{conv_downsample_forward.4} parent=5 // pred_region
      %s385 = ssub.s32 %s10, 2
      // Predicated region
      $region41: #{conv_downsample_forward.4} parent=39 // pred_check
        %p386 = pneg %p86
      $region42: #{conv_downsample_forward.4} parent=39 // pred_check_branch
        %388 = sbr.rel (%p386) target = $region44
      $region43: #{conv_downsample_forward.4} parent=39 // pred_region
        %s389 = smul.u32 8, %s16
        %p390 = scmp.lt.s32.totalorder %s389, 15
        %s391 = scalar_select %p390, %s389, 15
        %s392 = smul.addr %s391, 8
        %s393 = scalar_lea.vmem %s2, %s392
      $region44: #{conv_downsample_forward.4} parent=39 // pred_fallthru
        _
      // Predicated region
      $region45: #{conv_downsample_forward.4} parent=39 // pred_check
        %p394 = pneg %p112
      $region46: #{conv_downsample_forward.4} parent=39 // pred_check_branch
        %396 = sbr.rel (%p394) target = $region48
      $region47: #{conv_downsample_forward.4} parent=39 // pred_region
        %p397 = scmp.lt.s32.totalorder %s16, 1
        %s398 = scalar_select %p397, %s16, 1
        %s399 = smul.addr %s398, 8
        %s400 = scalar_lea.vmem %s3, %s399
      $region48: #{conv_downsample_forward.4} parent=39 // pred_fallthru
        _
    $region40: #{conv_downsample_forward.4} parent=5 // pred_fallthru
      _
  $region6: #{conv_downsample_forward.4} parent=0 // loop_footer
    %s14 = sadd.s32 1, %s10
  $region7: #{conv_downsample_forward.4} parent=0 // loop_footer_branch
    %9 = sbr.rel target = $region3
  $region8: #{conv_downsample_forward.4} parent=0 // loop_exit
    _

// kernel: conv_downsample_forward.6
$region0: #{conv_downsample_forward.6}
  #allocation0 [shape = 'u32[]', space=smem, size = 0x4, offset = 0x4, fixed_abs, tag = 'smem constant byte address 0x4 - core index']
  #allocation1 [shape = 'u32[144,128]{1,0:T(1,128)}', space=vmem, size = 0x12000, scoped, tag = 'internal scratch']
  %s0 = inlined_call_operand.vmem [shape: bf16[32,36], index: 0, kind: input, shape index: {}]
  %s1 = inlined_call_operand.vmem [shape: bf16[36,128], index: 1, kind: input, shape index: {}]
  %s2 = inlined_call_operand.vmem [shape: f32[32,128], index: 2, kind: output, shape index: {0}]
  %s3 = inlined_call_operand.vmem [shape: f32[1,8,128], index: 3, kind: output, shape index: {1}]
  %4 = xla_tuple %s2, %s3
  %s5 = sld [smem:[#allocation0]]
  $region26: #{conv_downsample_forward.6} parent=0
    _
  %s7 = ssub.s32 1, %s5
  %s8 = scalar_select 0, %s7, %s5
  // Predicated region
  $region2: #{conv_downsample_forward.6} parent=0 // pred_check
    _
  $region3: #{conv_downsample_forward.6} parent=0 // pred_check_branch
    %10 = sbr.rel (0) target = $region5
  $region4: #{conv_downsample_forward.6} parent=0 // pred_region
    _
  $region5: #{conv_downsample_forward.6} parent=0 // pred_fallthru
    _
  // Predicated region
  $region6: #{conv_downsample_forward.6} parent=0 // pred_check
    _
  $region7: #{conv_downsample_forward.6} parent=0 // pred_check_branch
    %12 = sbr.rel (0) target = $region9
  $region8: #{conv_downsample_forward.6} parent=0 // pred_region
    _
  $region9: #{conv_downsample_forward.6} parent=0 // pred_fallthru
    _
  %v14 = vld [vmem:[%s0] sm:$0xf]
  %v15 = vld [vmem:[%s0 + $0x4] sm:$0xf]
  %v16 = vld [vmem:[%s0 + $0x8] sm:$0xf]
  %v17 = vld [vmem:[%s0 + $0xc] sm:$0xf]
  %v18 = vld [vmem:[%s1] sm:$0xf]
  %v19 = vld [vmem:[%s1 + $0x4] sm:$0xf]
  %v20 = vld [vmem:[%s1 + $0x8] sm:$0xf]
  %v21 = vld [vmem:[%s1 + $0xc] sm:$0xf]
  %v22 = vld [vmem:[%s1 + $0x10] sm:$0x3]
  %v27 = vunpack.c.l.b16 %v14
  %v28 = vunpack.c.l.b16 %v15
  %v29 = vunpack.c.l.b16 %v16
  %v30 = vunpack.c.l.b16 %v17
  %v31 = vpack.c.b16 %v28, %v27
  %v32 = vpack.c.b16 %v30, %v29
  %v38 = vunpack.c.l.b16 %v18
  %v39 = vunpack.c.l.b16 %v19
  %v40 = vunpack.c.l.b16 %v20
  %v41 = vunpack.c.l.b16 %v21
  %v42 = vunpack.c.l.b16 %v22
  %v43 = vpack.c.b16 %v39, %v38
  %v44 = vpack.c.b16 %v41, %v40
  %v45 = vpack.c.b16 %v42, %v42
  %vm48 = vcmask 293888
  %v50 = vsel %vm48, %v31, 0
  %v53 = vsel %vm48, %v32, 0
  %vm55 = vcmask 1041408
  %v57 = vsel %vm55, %v45, 0
  %59 = vmatprep.subr.bf16.mxu0 0
  %60 = vmatpush1.bf16.msra.mxu0 0
  %61 = vmatprep.subr.bf16.mxu0 0
  %62 = vmatpush1.bf16.msra.mxu0 0
  %63 = vmatprep.subr.bf16.mxu0 0
  %64 = vmatpush1.bf16.msra.mxu0 0
  %65 = vmatprep.subr.bf16.mxu0 0
  %66 = vmatpush1.bf16.msra.mxu0 0
  %67 = vmatprep.subr.bf16.mxu0 0
  %68 = vmatpush1.bf16.msra.mxu0 0
  %69 = vmatprep.subr.bf16.mxu0 0
  %70 = vmatpush1.bf16.msra.mxu0 %v57
  %71 = vmatprep.subr.bf16.mxu0 0
  %72 = vmatpush1.bf16.msra.mxu0 %v44
  %73 = vmatprep.subr.bf16.mxu0 0
  %74 = vmatpush1.bf16.msra.mxu0 %v43
  %75 = vmatprep.subr.bf16.mxu0 0
  %76 = vmatpush2.bf16.msra.mxu0 0
  %77 = vmatprep.subr.bf16.mxu0 0
  %78 = vmatpush2.bf16.msra.mxu0 0
  %79 = vmatprep.subr.bf16.mxu0 0
  %80 = vmatpush2.bf16.msra.mxu0 0
  %81 = vmatprep.subr.bf16.mxu0 0
  %82 = vmatpush2.bf16.msra.mxu0 0
  %83 = vmatprep.subr.bf16.mxu0 0
  %84 = vmatpush2.bf16.msra.mxu0 0
  %85 = vmatprep.subr.bf16.mxu0 0
  %86 = vmatpush2.bf16.msra.mxu0 0
  %87 = vmatprep.subr.bf16.mxu0 0
  %88 = vmatpush2.bf16.msra.mxu0 0
  %89 = vmatprep.subr.bf16.mxu0 0
  %90 = vmatpush2.bf16.msra.mxu0 0
  %91 = vmatprep.mubr.bf16.mxu0 0
  %92 = vmatmul.mubr.bf16.gmra.mxu0 %v50
  %v93 = vpop.f32.mrf.mxu0
  %v94 = vadd.f32 0.0, %v93
  %v95 = vpop.f32.mrf.mxu0
  %v96 = vpop.f32.mrf.mxu0
  %v97 = vadd.f32 0.0, %v96
  %v98 = vpop.f32.mrf.mxu0
  %99 = vmatprep.mubr.bf16.mxu0 0
  %100 = vmatmul.mubr.bf16.gmra.mxu0 %v53
  %v101 = vpop.f32.mrf.mxu0
  %v102 = vadd.f32 0.0, %v101
  %v103 = vpop.f32.mrf.mxu0
  %v104 = vpop.f32.mrf.mxu0
  %v105 = vadd.f32 0.0, %v104
  %v106 = vpop.f32.mrf.mxu0
  %107 = vdwg.mxu0
  %108 = vst [vmem:[%s2] sm:$0xff] %v94
  %109 = vst [vmem:[%s2 + $0x8] sm:$0xff] %v97
  %110 = vst [vmem:[%s2 + $0x10] sm:$0xff] %v102
  %111 = vst [vmem:[%s2 + $0x18] sm:$0xff] %v105
  %v112 = vadd.f32 %v94, %v97
  %v113 = vadd.f32 %v112, %v102
  %v114 = vadd.f32 %v113, %v105
  %v115 = vrot.slane %v114, 4
  %v116 = vadd.f32 %v114, %v115
  %v117 = vrot.slane %v116, 2
  %v118 = vadd.f32 %v116, %v117
  %v119 = vrot.slane %v118, 1
  %v120 = vadd.f32 %v118, %v119
  %v121 = vmul.f32 %v94, %v94
  %v122 = vmul.f32 %v97, %v97
  %v123 = vmul.f32 %v102, %v102
  %v124 = vmul.f32 %v105, %v105
  %v125 = vadd.f32 %v121, %v122
  %v126 = vadd.f32 %v125, %v123
  %v127 = vadd.f32 %v126, %v124
  %v128 = vrot.slane %v127, 4
  %v129 = vadd.f32 %v127, %v128
  %v130 = vrot.slane %v129, 2
  %v131 = vadd.f32 %v129, %v130
  %v132 = vrot.slane %v131, 1
  %v133 = vadd.f32 %v131, %v132
  %v134 = vlaneseq
  %v135 = vshrl.u32 %v134, 7
  %vm136 = vcmp.eq.s32.totalorder %v135, 0
  %vm137 = vcmp.eq.s32.totalorder %v135, 1
  %v138 = vsel %vm137, %v133, 0.0
  %v139 = vsel %vm136, %v120, %v138
  %140 = vst [vmem:[%s3] sm:$0xff] %v139
  // Predicated region
  $region10: #{conv_downsample_forward.6} parent=0 // pred_check
    _
  $region11: #{conv_downsample_forward.6} parent=0 // pred_check_branch
    %142 = sbr.rel (0) target = $region13
  $region12: #{conv_downsample_forward.6} parent=0 // pred_region
    _
  $region13: #{conv_downsample_forward.6} parent=0 // pred_fallthru
    _
  // Predicated region
  $region14: #{conv_downsample_forward.6} parent=0 // pred_check
    _
  $region15: #{conv_downsample_forward.6} parent=0 // pred_check_branch
    %144 = sbr.rel (0) target = $region17
  $region16: #{conv_downsample_forward.6} parent=0 // pred_region
    _
  $region17: #{conv_downsample_forward.6} parent=0 // pred_fallthru
    _
  // Predicated region
  $region18: #{conv_downsample_forward.6} parent=0 // pred_check
    _
  $region19: #{conv_downsample_forward.6} parent=0 // pred_check_branch
    %146 = sbr.rel (0) target = $region21
  $region20: #{conv_downsample_forward.6} parent=0 // pred_region
    _
  $region21: #{conv_downsample_forward.6} parent=0 // pred_fallthru
    _
  // Predicated region
  $region22: #{conv_downsample_forward.6} parent=0 // pred_check
    _
  $region23: #{conv_downsample_forward.6} parent=0 // pred_check_branch
    %148 = sbr.rel (0) target = $region25
  $region24: #{conv_downsample_forward.6} parent=0 // pred_region
    _
  $region25: #{conv_downsample_forward.6} parent=0 // pred_fallthru
    _

// kernel: conv_downsample_forward.7
$region0: #{conv_downsample_forward.7}
  #allocation0 [shape = 'u32[]', space=smem, size = 0x4, offset = 0x4, fixed_abs, tag = 'smem constant byte address 0x4 - core index']
  #allocation1 [shape = 'u32[144,128]{1,0:T(1,128)}', space=vmem, size = 0x12000, scoped, tag = 'internal scratch']
  %s0 = inlined_call_operand.vmem [shape: f32[32,128], index: 0, kind: input, shape index: {}]
  %s1 = inlined_call_operand.vmem [shape: f32[1,128], index: 1, kind: input, shape index: {}]
  %s2 = inlined_call_operand.vmem [shape: f32[1,128], index: 2, kind: input, shape index: {}]
  %s3 = inlined_call_operand.hbm [shape: f32[32,128], index: 3, kind: output, shape index: {}]
  %s4 = sld [smem:[#allocation0]]
  $region22: #{conv_downsample_forward.7} parent=0
    _
  %s6 = ssub.s32 1, %s4
  %s7 = scalar_select 0, %s6, %s4
  $region1: #{conv_downsample_forward.7} parent=0
    #allocation2 [shape = 'u8[16384]{0}', space=vmem, size = 0x4000, scoped, tag = 'output window, operand 0, single buffered']
    #allocation3 [shape = 's32[1]{0}', space=sflag, size = 0x4, scoped, tag = 'scoped memory for conv_downsample_forward.7']
    %8 = vsyncpa [#allocation3], 0
    // Predicated region
    $region2: #{conv_downsample_forward.7} parent=1 // pred_check
      _
    $region3: #{conv_downsample_forward.7} parent=1 // pred_check_branch
      %10 = sbr.rel (0) target = $region5
    $region4: #{conv_downsample_forward.7} parent=1 // pred_region
      _
    $region5: #{conv_downsample_forward.7} parent=1 // pred_fallthru
      _
    // Predicated region
    $region6: #{conv_downsample_forward.7} parent=1 // pred_check
      _
    $region7: #{conv_downsample_forward.7} parent=1 // pred_check_branch
      %12 = sbr.rel (0) target = $region9
    $region8: #{conv_downsample_forward.7} parent=1 // pred_region
      _
    $region9: #{conv_downsample_forward.7} parent=1 // pred_fallthru
      _
    // Predicated region
    $region10: #{conv_downsample_forward.7} parent=1 // pred_check
      _
    $region11: #{conv_downsample_forward.7} parent=1 // pred_check_branch
      %14 = sbr.rel (0) target = $region13
    $region12: #{conv_downsample_forward.7} parent=1 // pred_region
      _
    $region13: #{conv_downsample_forward.7} parent=1 // pred_fallthru
      _
    %v15 = vld [vmem:[%s0] sm:$0xff]
    %v16 = vld [vmem:[%s0 + $0x8] sm:$0xff]
    %v17 = vld [vmem:[%s0 + $0x10] sm:$0xff]
    %v18 = vld [vmem:[%s0 + $0x18] sm:$0xff]
    %v19 = vld [vmem:[%s1] sm:$0x1]
    %v21 = vlaneseq
    %v22 = vshrl.u32 %v21, 7
    %v23 = vsub.s32 0, %v22
    %v24 = vrot.slane %v19, %v23
    %v26 = vmul.f32 %v15, %v24
    %v27 = vmul.f32 %v16, %v24
    %v28 = vmul.f32 %v17, %v24
    %v29 = vmul.f32 %v18, %v24
    %v30 = vld [vmem:[%s2] sm:$0x1]
    %v32 = vlaneseq
    %v33 = vshrl.u32 %v32, 7
    %v34 = vsub.s32 0, %v33
    %v35 = vrot.slane %v30, %v34
    %v37 = vadd.f32 %v26, %v35
    %v38 = vadd.f32 %v27, %v35
    %v39 = vadd.f32 %v28, %v35
    %v40 = vadd.f32 %v29, %v35
    %vm41 = vcmp.ge.f32.partialorder %v37, 0.0
    %vm42 = vcmp.ge.f32.partialorder %v38, 0.0
    %vm43 = vcmp.ge.f32.partialorder %v39, 0.0
    %vm44 = vcmp.ge.f32.partialorder %v40, 0.0
    %v45 = vmul.f32 %v37, 0.01
    %v46 = vmul.f32 %v38, 0.01
    %v47 = vmul.f32 %v39, 0.01
    %v48 = vmul.f32 %v40, 0.01
    %v49 = vsel %vm41, %v37, %v45
    %v50 = vsel %vm42, %v38, %v46
    %v51 = vsel %vm43, %v39, %v47
    %v52 = vsel %vm44, %v40, %v48
    %53 = vst [vmem:[#allocation2] sm:$0xff] %v49
    %54 = vst [vmem:[#allocation2 + $0x8] sm:$0xff] %v50
    %55 = vst [vmem:[#allocation2 + $0x10] sm:$0xff] %v51
    %56 = vst [vmem:[#allocation2 + $0x18] sm:$0xff] %v52
    // Predicated region
    $region14: #{conv_downsample_forward.7} parent=1 // pred_check
      _
    $region15: #{conv_downsample_forward.7} parent=1 // pred_check_branch
      %58 = sbr.rel (0) target = $region17
    $region16: #{conv_downsample_forward.7} parent=1 // pred_region
      %s60 = ssub.s32 512, 512
      %61 = vsyncadd [#allocation3], %s60
      %s62 = sshll.u32 [#allocation2], 4
      %s63 = int_to_ptr.vmem [resolvable:$true] %s62
      %68 = dma.vmem_to_hbm [thread:$0]  %s63, 512, %s3, [#allocation3], 128, 128, 8
    $region17: #{conv_downsample_forward.7} parent=1 // pred_fallthru
      _
    // Predicated region
    $region18: #{conv_downsample_forward.7} parent=1 // pred_check
      _
    $region19: #{conv_downsample_forward.7} parent=1 // pred_check_branch
      %70 = sbr.rel (0) target = $region21
    $region20: #{conv_downsample_forward.7} parent=1 // pred_region
      %71 = dma.done [#allocation3], 512
    $region21: #{conv_downsample_forward.7} parent=1 // pred_fallthru
      _
    %72 = vsyncpa [#allocation3], 1

</llo_original>
